<compile_context>
chip_gen: v7x
topology: tpu7x:2x2x1
jax: 0.10.0
libtpu: 0.0.40
codegen_flags: <defaults>
</compile_context>

<pallas_src>
import jax
import jax.numpy as jnp
from jax.experimental import pallas as pl
from jax.experimental.pallas import tpu as pltpu


def _round_up(x, m):
    return (x + m - 1) // m * m


def _pick_tile(dim, candidates=(512, 256, 128)):
    """Largest candidate that divides `dim` exactly, else the full dim."""
    for c in candidates:
        if dim % c == 0:
            return c
    return dim


def _geglu_kernel(x_ref, wv_ref, wg_ref, bv_ref, bg_ref, o_ref, acc_v, acc_g):
    k = pl.program_id(2)

    @pl.when(k == 0)
    def _init():
        # Fold the bias into the accumulators so the final-K epilogue only has
        # to do GELU + multiply + cast (shorter store critical path).
        bv = bv_ref[...].astype(jnp.float32)
        bg = bg_ref[...].astype(jnp.float32)
        acc_v[...] = jnp.broadcast_to(bv, acc_v.shape)
        acc_g[...] = jnp.broadcast_to(bg, acc_g.shape)

    xt = x_ref[...]
    acc_v[...] += jnp.dot(xt, wv_ref[...], preferred_element_type=jnp.float32)
    acc_g[...] += jnp.dot(xt, wg_ref[...], preferred_element_type=jnp.float32)

    @pl.when(k == pl.num_programs(2) - 1)
    def _finalize():
        val = acc_v[...]
        gate = acc_g[...]
        # exact GELU (matches torch.nn.functional.gelu default):
        #   0.5 * g * (1 + erf(g / sqrt(2)))
        gelu = 0.5 * gate * (1.0 + jax.lax.erf(gate * 0.7071067811865476))
        o_ref[...] = (val * gelu).astype(o_ref.dtype)


def geglu(x, weight, bias, *, tm=512):
    """GEGLU forward.

    x:      (..., dim_in)
    weight: (2*dim_out, dim_in)   -- PyTorch nn.Linear layout
    bias:   (2*dim_out,)
    returns (..., dim_out)
    """
    *lead, K = x.shape
    two_n, k_w = weight.shape
    assert k_w == K and two_n % 2 == 0
    N = two_n // 2
    assert bias.shape == (two_n,)

    x2 = x.reshape(-1, K)
    M = x2.shape[0]

    wt = weight.T.astype(x.dtype)          # (K, 2N)  one-time wrapper-side layout prep
    w_val = wt[:, :N]                      # value half  (K, N)
    w_gate = wt[:, N:]                     # gate half   (K, N)
    b_val = bias[:N].reshape(1, N)
    b_gate = bias[N:].reshape(1, N)

    tn = _pick_tile(N)                     # lane-dense (multiple of 128) when possible
    tk = _pick_tile(K)
    tile_m = M if M <= tm else _round_up(tm, 8)

    grid = (pl.cdiv(M, tile_m), N // tn, K // tk)

    out = pl.pallas_call(
        _geglu_kernel,
        out_shape=jax.ShapeDtypeStruct((M, N), x.dtype),
        grid_spec=pltpu.PrefetchScalarGridSpec(
            num_scalar_prefetch=0,
            grid=grid,
            in_specs=[
                pl.BlockSpec((tile_m, tk), lambda i, j, k: (i, k)),   # x tile
                pl.BlockSpec((tk, tn),     lambda i, j, k: (k, j)),   # W_value tile
                pl.BlockSpec((tk, tn),     lambda i, j, k: (k, j)),   # W_gate tile
                pl.BlockSpec((1, tn),      lambda i, j, k: (0, j)),   # b_value
                pl.BlockSpec((1, tn),      lambda i, j, k: (0, j)),   # b_gate
            ],
            out_specs=pl.BlockSpec((tile_m, tn), lambda i, j, k: (i, j)),
            scratch_shapes=[
                pltpu.VMEM((tile_m, tn), jnp.float32),   # value accumulator
                pltpu.VMEM((tile_m, tn), jnp.float32),   # gate accumulator
            ],
        ),
        compiler_params=pltpu.CompilerParams(
            dimension_semantics=("parallel", "parallel", "arbitrary"),
            # Raised above the small scoped defaults, but capped so the same
            # tiles also fit v7x's 64 MiB physical VMEM.
            vmem_limit_bytes=48 * 1024 * 1024,
        ),
        cost_estimate=pl.CostEstimate(
            flops=4 * M * K * N,           # two matmuls of (M,K)x(K,N)
            transcendentals=M * N,         # erf per output element
            bytes_accessed=(x2.size + 2 * K * N + 2 * N + M * N)
            * jnp.dtype(x.dtype).itemsize,
        ),
    )(x2, w_val, w_gate, b_val, b_gate)

    return out.reshape(*lead, N)


if __name__ == "__main__":
    key = jax.random.PRNGKey(0)
    kx, kw, kb = jax.random.split(key, 3)

    # small shapes consistent with the module: batch=2, seq=8, dim_in=32, dim_out=32
    B, S, dim_in, dim_out = 2, 8, 32, 32
    x = jax.random.normal(kx, (B, S, dim_in), dtype=jnp.float32)
    weight = 0.1 * jax.random.normal(kw, (2 * dim_out, dim_in), dtype=jnp.float32)
    bias = 0.1 * jax.random.normal(kb, (2 * dim_out,), dtype=jnp.float32)

    out = geglu(x, weight, bias)
    out = jax.block_until_ready(out)

    # reference: y = x @ W.T + b ; val, gate = chunk(y, 2, -1) ; val * gelu(gate)
    y = jnp.einsum("bsd,nd->bsn", x, weight) + bias
    val, gate = jnp.split(y, 2, axis=-1)
    ref = val * jax.nn.gelu(gate, approximate=False)

    assert out.shape == (B, S, dim_out)
    assert jnp.allclose(out, ref, atol=1e-2, rtol=1e-2), float(jnp.max(jnp.abs(out - ref)))

    print("KERNEL_OK")
</pallas_src>

<mosaic_0001>
module attributes {stable_mosaic.version = 11 : i64} {
  func.func @_geglu_kernel(%arg0: i32, %arg1: i32, %arg2: i32, %arg3: memref<16x32xf32, #tpu.memory_space<vmem>>, %arg4: memref<32x32xf32, #tpu.memory_space<vmem>>, %arg5: memref<32x32xf32, #tpu.memory_space<vmem>>, %arg6: memref<1x32xf32, #tpu.memory_space<vmem>>, %arg7: memref<1x32xf32, #tpu.memory_space<vmem>>, %arg8: memref<16x32xf32, #tpu.memory_space<vmem>>, %arg9: memref<16x32xf32, #tpu.memory_space<vmem>>, %arg10: memref<16x32xf32, #tpu.memory_space<vmem>>) attributes {dimension_semantics = [#tpu.dimension_semantics<parallel>, #tpu.dimension_semantics<parallel>, #tpu.dimension_semantics<arbitrary>], iteration_bounds = array<i64: 1, 1, 1>, scalar_prefetch = 0 : i64, scratch_operands = 2 : i64, tpu.core_type = #tpu.core_type<tc>, window_params = [{transform_indices = @transform_0, window_bounds = array<i64: 16, 32>}, {transform_indices = @transform_1, window_bounds = array<i64: 32, 32>}, {transform_indices = @transform_2, window_bounds = array<i64: 32, 32>}, {transform_indices = @transform_3, window_bounds = array<i64: 1, 32>}, {transform_indices = @transform_4, window_bounds = array<i64: 1, 32>}, {transform_indices = @transform_5, window_bounds = array<i64: 16, 32>}]} {
    %c0_i32 = arith.constant 0 : i32
    %0 = arith.cmpi eq, %arg2, %c0_i32 : i32
    %1 = arith.extui %0 : i1 to i32
    %c0_i32_0 = arith.constant 0 : i32
    %2 = arith.cmpi ne, %1, %c0_i32_0 : i32
    scf.if %2 {
      %c0_17 = arith.constant 0 : index
      %c0_18 = arith.constant 0 : index
      %17 = vector.load %arg6[%c0_17, %c0_18] : memref<1x32xf32, #tpu.memory_space<vmem>>, vector<1x32xf32>
      %c0_19 = arith.constant 0 : index
      %c0_20 = arith.constant 0 : index
      %18 = vector.load %arg7[%c0_19, %c0_20] : memref<1x32xf32, #tpu.memory_space<vmem>>, vector<1x32xf32>
      %19 = vector.shape_cast %17 : vector<1x32xf32> to vector<1x32xf32>
      %20 = vector.broadcast %19 : vector<1x32xf32> to vector<16x32xf32>
      %c0_21 = arith.constant 0 : index
      %c0_22 = arith.constant 0 : index
      %21 = vector.load %arg9[%c0_21, %c0_22] : memref<16x32xf32, #tpu.memory_space<vmem>>, vector<16x32xf32>
      tpu.vector_store %arg9[%c0_21, %c0_22], %20 {strides = array<i32>} : memref<16x32xf32, #tpu.memory_space<vmem>>, vector<16x32xf32>,
      %22 = vector.shape_cast %18 : vector<1x32xf32> to vector<1x32xf32>
      %23 = vector.broadcast %22 : vector<1x32xf32> to vector<16x32xf32>
      %c0_23 = arith.constant 0 : index
      %c0_24 = arith.constant 0 : index
      %24 = vector.load %arg10[%c0_23, %c0_24] : memref<16x32xf32, #tpu.memory_space<vmem>>, vector<16x32xf32>
      tpu.vector_store %arg10[%c0_23, %c0_24], %23 {strides = array<i32>} : memref<16x32xf32, #tpu.memory_space<vmem>>, vector<16x32xf32>,
    } else {
    }
    %c0 = arith.constant 0 : index
    %c0_1 = arith.constant 0 : index
    %3 = vector.load %arg3[%c0, %c0_1] : memref<16x32xf32, #tpu.memory_space<vmem>>, vector<16x32xf32>
    %c0_2 = arith.constant 0 : index
    %c0_3 = arith.constant 0 : index
    %4 = vector.load %arg9[%c0_2, %c0_3] : memref<16x32xf32, #tpu.memory_space<vmem>>, vector<16x32xf32>
    %c0_4 = arith.constant 0 : index
    %c0_5 = arith.constant 0 : index
    %5 = vector.load %arg4[%c0_4, %c0_5] : memref<32x32xf32, #tpu.memory_space<vmem>>, vector<32x32xf32>
    %cst = arith.constant dense<0.000000e+00> : vector<16x32xf32>
    %6 = tpu.matmul %3, %5, %cst {dimension_numbers = #tpu.dot_dimension_numbers<[1], [0], [0], [1], [0, 0, 1, 1], [], []>} : vector<16x32xf32>, vector<32x32xf32>, vector<16x32xf32> -> vector<16x32xf32>
    %7 = arith.addf %4, %6 : vector<16x32xf32>
    %c0_6 = arith.constant 0 : index
    %c0_7 = arith.constant 0 : index
    %8 = vector.load %arg9[%c0_6, %c0_7] : memref<16x32xf32, #tpu.memory_space<vmem>>, vector<16x32xf32>
    tpu.vector_store %arg9[%c0_6, %c0_7], %7 {strides = array<i32>} : memref<16x32xf32, #tpu.memory_space<vmem>>, vector<16x32xf32>,
    %c0_8 = arith.constant 0 : index
    %c0_9 = arith.constant 0 : index
    %9 = vector.load %arg10[%c0_8, %c0_9] : memref<16x32xf32, #tpu.memory_space<vmem>>, vector<16x32xf32>
    %c0_10 = arith.constant 0 : index
    %c0_11 = arith.constant 0 : index
    %10 = vector.load %arg5[%c0_10, %c0_11] : memref<32x32xf32, #tpu.memory_space<vmem>>, vector<32x32xf32>
    %cst_12 = arith.constant dense<0.000000e+00> : vector<16x32xf32>
    %11 = tpu.matmul %3, %10, %cst_12 {dimension_numbers = #tpu.dot_dimension_numbers<[1], [0], [0], [1], [0, 0, 1, 1], [], []>} : vector<16x32xf32>, vector<32x32xf32>, vector<16x32xf32> -> vector<16x32xf32>
    %12 = arith.addf %9, %11 : vector<16x32xf32>
    %c0_13 = arith.constant 0 : index
    %c0_14 = arith.constant 0 : index
    %13 = vector.load %arg10[%c0_13, %c0_14] : memref<16x32xf32, #tpu.memory_space<vmem>>, vector<16x32xf32>
    tpu.vector_store %arg10[%c0_13, %c0_14], %12 {strides = array<i32>} : memref<16x32xf32, #tpu.memory_space<vmem>>, vector<16x32xf32>,
    %c0_i32_15 = arith.constant 0 : i32
    %14 = arith.cmpi eq, %arg2, %c0_i32_15 : i32
    %15 = arith.extui %14 : i1 to i32
    %c0_i32_16 = arith.constant 0 : i32
    %16 = arith.cmpi ne, %15, %c0_i32_16 : i32
    scf.if %16 {
      %c0_17 = arith.constant 0 : index
      %c0_18 = arith.constant 0 : index
      %17 = vector.load %arg9[%c0_17, %c0_18] : memref<16x32xf32, #tpu.memory_space<vmem>>, vector<16x32xf32>
      %c0_19 = arith.constant 0 : index
      %c0_20 = arith.constant 0 : index
      %18 = vector.load %arg10[%c0_19, %c0_20] : memref<16x32xf32, #tpu.memory_space<vmem>>, vector<16x32xf32>
      %cst_21 = arith.constant 5.000000e-01 : f32
      %19 = vector.broadcast %cst_21 : f32 to vector<16x32xf32>
      %20 = arith.mulf %19, %18 : vector<16x32xf32>
      %cst_22 = arith.constant 0.707106769 : f32
      %21 = vector.broadcast %cst_22 : f32 to vector<16x32xf32>
      %22 = arith.mulf %18, %21 : vector<16x32xf32>
      %23 = math.erf %22 : vector<16x32xf32>
      %cst_23 = arith.constant 1.000000e+00 : f32
      %24 = vector.broadcast %cst_23 : f32 to vector<16x32xf32>
      %25 = arith.addf %24, %23 : vector<16x32xf32>
      %26 = arith.mulf %20, %25 : vector<16x32xf32>
      %27 = arith.mulf %17, %26 : vector<16x32xf32>
      %c0_24 = arith.constant 0 : index
      %c0_25 = arith.constant 0 : index
      %28 = vector.load %arg8[%c0_24, %c0_25] : memref<16x32xf32, #tpu.memory_space<vmem>>, vector<16x32xf32>
      tpu.vector_store %arg8[%c0_24, %c0_25], %27 {strides = array<i32>} : memref<16x32xf32, #tpu.memory_space<vmem>>, vector<16x32xf32>,
    } else {
    }
    return
  }
  func.func @transform_0(%arg0: i32, %arg1: i32, %arg2: i32) -> (i32, i32) {
    %c0_i32 = arith.constant 0 : i32
    return %arg0, %arg2 : i32, i32
  }
  func.func @transform_1(%arg0: i32, %arg1: i32, %arg2: i32) -> (i32, i32) {
    %c0_i32 = arith.constant 0 : i32
    return %arg2, %arg1 : i32, i32
  }
  func.func @transform_2(%arg0: i32, %arg1: i32, %arg2: i32) -> (i32, i32) {
    %c0_i32 = arith.constant 0 : i32
    return %arg2, %arg1 : i32, i32
  }
  func.func @transform_3(%arg0: i32, %arg1: i32, %arg2: i32) -> (i32, i32) {
    %c0_i32 = arith.constant 0 : i32
    %c0_i32_0 = arith.constant 0 : i32
    return %c0_i32, %arg1 : i32, i32
  }
  func.func @transform_4(%arg0: i32, %arg1: i32, %arg2: i32) -> (i32, i32) {
    %c0_i32 = arith.constant 0 : i32
    %c0_i32_0 = arith.constant 0 : i32
    return %c0_i32, %arg1 : i32, i32
  }
  func.func @transform_5(%arg0: i32, %arg1: i32, %arg2: i32) -> (i32, i32) {
    %c0_i32 = arith.constant 0 : i32
    return %arg0, %arg1 : i32, i32
  }
}

</mosaic_0001>

<llo_original>
// kernel: tpu_custom_call.1
$region0: #{tpu_custom_call.1}
  #allocation0 [shape = 'u32[]', space=smem, size = 0x4, offset = 0x4, fixed_abs, tag = 'smem constant byte address 0x4 - core index']
  #allocation1 [shape = 'u32[144,128]{1,0:T(1,128)}', space=vmem, size = 0x12000, scoped, tag = 'internal scratch']
  #allocation2 [shape = 'f32[16,32]{1,0:T(8,128)}', space=vmem, size = 0x2000, scoped, tag = 'scratch operand']
  #allocation3 [shape = 'f32[16,32]{1,0:T(8,128)}', space=vmem, size = 0x2000, scoped, tag = 'scratch operand']
  %s0 = inlined_call_operand.hbm [shape: f32[16,32], index: 0, kind: input, shape index: {}]
  %s1 = inlined_call_operand.hbm [shape: f32[32,32], index: 1, kind: input, shape index: {}]
  %s2 = inlined_call_operand.hbm [shape: f32[32,32], index: 2, kind: input, shape index: {}]
  %s3 = inlined_call_operand.vmem [shape: f32[1,32], index: 3, kind: input, shape index: {}]
  %s4 = inlined_call_operand.vmem [shape: f32[1,32], index: 4, kind: input, shape index: {}]
  %s5 = inlined_call_operand.hbm [shape: f32[16,32], index: 5, kind: output, shape index: {}]
  %s6 = sld [smem:[#allocation0]]
  $region50: #{tpu_custom_call.1} parent=0
    _
  %s8 = ssub.s32 1, %s6
  %s9 = scalar_select 0, %s8, %s6
  $region1: #{tpu_custom_call.1} parent=0
    #allocation4 [shape = 'u8[8192]{0}', space=vmem, size = 0x2000, scoped, tag = 'input window, operand 0, single buffered']
    #allocation5 [shape = 's32[1]{0}', space=sflag, size = 0x4, scoped, tag = 'scoped memory for tpu_custom_call.1']
    #allocation6 [shape = 's32[1]{0}', space=sflag, size = 0x4, scoped, tag = 'scoped memory for tpu_custom_call.1']
    #allocation7 [shape = 'u8[16384]{0}', space=vmem, size = 0x4000, scoped, tag = 'input window, operand 1, single buffered']
    #allocation8 [shape = 's32[1]{0}', space=sflag, size = 0x4, scoped, tag = 'scoped memory for tpu_custom_call.1']
    #allocation9 [shape = 'u8[16384]{0}', space=vmem, size = 0x4000, scoped, tag = 'input window, operand 2, single buffered']
    #allocation10 [shape = 'u8[8192]{0}', space=vmem, size = 0x2000, scoped, tag = 'output window, operand 0, single buffered']
    %10 = vsyncpa [#allocation5], 0
    %11 = vsyncpa [#allocation8], 0
    %12 = vsyncpa [#allocation6], 0
    // Predicated region
    $region2: #{tpu_custom_call.1} parent=1 // pred_check
      _
    $region3: #{tpu_custom_call.1} parent=1 // pred_check_branch
      %14 = sbr.rel (0) target = $region5
    $region4: #{tpu_custom_call.1} parent=1 // pred_region
      %s16 = ssub.s32 256, 256
      %17 = vsyncadd [#allocation5], %s16
      %s18 = sshll.u32 [#allocation4], 4
      %s19 = int_to_ptr.vmem [resolvable:$true] %s18
      %24 = dma.hbm_to_vmem [thread:$0]  %s0, 256, %s19, [#allocation5], 128, 128, 8
    $region5: #{tpu_custom_call.1} parent=1 // pred_fallthru
      _
    // Predicated region
    $region6: #{tpu_custom_call.1} parent=1 // pred_check
      _
    $region7: #{tpu_custom_call.1} parent=1 // pred_check_branch
      %26 = sbr.rel (0) target = $region9
    $region8: #{tpu_custom_call.1} parent=1 // pred_region
      %s28 = ssub.s32 512, 512
      %29 = vsyncadd [#allocation8], %s28
      %s30 = sshll.u32 [#allocation7], 4
      %s31 = int_to_ptr.vmem [resolvable:$true] %s30
      %36 = dma.hbm_to_vmem [thread:$0]  %s1, 512, %s31, [#allocation8], 128, 128, 8
    $region9: #{tpu_custom_call.1} parent=1 // pred_fallthru
      _
    // Predicated region
    $region10: #{tpu_custom_call.1} parent=1 // pred_check
      _
    $region11: #{tpu_custom_call.1} parent=1 // pred_check_branch
      %38 = sbr.rel (0) target = $region13
    $region12: #{tpu_custom_call.1} parent=1 // pred_region
      %s40 = ssub.s32 512, 512
      %41 = vsyncadd [#allocation8], %s40
      %s42 = sshll.u32 [#allocation9], 4
      %s43 = int_to_ptr.vmem [resolvable:$true] %s42
      %48 = dma.hbm_to_vmem [thread:$0]  %s2, 512, %s43, [#allocation8], 128, 128, 8
    $region13: #{tpu_custom_call.1} parent=1 // pred_fallthru
      _
    // Predicated region
    $region14: #{tpu_custom_call.1} parent=1 // pred_check
      _
    $region15: #{tpu_custom_call.1} parent=1 // pred_check_branch
      %50 = sbr.rel (0) target = $region17
    $region16: #{tpu_custom_call.1} parent=1 // pred_region
      _
    $region17: #{tpu_custom_call.1} parent=1 // pred_fallthru
      _
    // Predicated region
    $region18: #{tpu_custom_call.1} parent=1 // pred_check
      _
    $region19: #{tpu_custom_call.1} parent=1 // pred_check_branch
      %52 = sbr.rel (0) target = $region21
    $region20: #{tpu_custom_call.1} parent=1 // pred_region
      _
    $region21: #{tpu_custom_call.1} parent=1 // pred_fallthru
      _
    // Predicated region
    $region22: #{tpu_custom_call.1} parent=1 // pred_check
      _
    $region23: #{tpu_custom_call.1} parent=1 // pred_check_branch
      %54 = sbr.rel (0) target = $region25
    $region24: #{tpu_custom_call.1} parent=1 // pred_region
      %55 = dma.done [#allocation5], 256
    $region25: #{tpu_custom_call.1} parent=1 // pred_fallthru
      _
    // Predicated region
    $region26: #{tpu_custom_call.1} parent=1 // pred_check
      _
    $region27: #{tpu_custom_call.1} parent=1 // pred_check_branch
      %57 = sbr.rel (0) target = $region29
    $region28: #{tpu_custom_call.1} parent=1 // pred_region
      %58 = dma.done [#allocation8], 512
    $region29: #{tpu_custom_call.1} parent=1 // pred_fallthru
      _
    // Predicated region
    $region30: #{tpu_custom_call.1} parent=1 // pred_check
      _
    $region31: #{tpu_custom_call.1} parent=1 // pred_check_branch
      %60 = sbr.rel (0) target = $region33
    $region32: #{tpu_custom_call.1} parent=1 // pred_region
      %61 = dma.done [#allocation8], 512
    $region33: #{tpu_custom_call.1} parent=1 // pred_fallthru
      _
    %p62 = scmp.eq.s32.totalorder 0, 0
    // Predicated region
    $region34: #{tpu_custom_call.1} parent=1 // pred_check
      %p63 = pneg %p62
    $region35: #{tpu_custom_call.1} parent=1 // pred_check_branch
      %65 = sbr.rel (%p63) target = $region37
    $region36: #{tpu_custom_call.1} parent=1 // pred_region
      %v66 = vld [vmem:[%s3] sm:$0x1]
      %v67 = vld [vmem:[%s4] sm:$0x1]
      %v69 = vlaneseq
      %v70 = vshrl.u32 %v69, 7
      %v71 = vsub.s32 0, %v70
      %v72 = vrot.slane %v66, %v71
      %vm74 = vcmask 261120
      %75 = vst.msk [vmem:[#allocation2] sm:$0xff] %vm74, %v72
      %76 = vst.msk [vmem:[#allocation2 + $0x8] sm:$0xff] %vm74, %v72
      %v78 = vlaneseq
      %v79 = vshrl.u32 %v78, 7
      %v80 = vsub.s32 0, %v79
      %v81 = vrot.slane %v67, %v80
      %83 = vst.msk [vmem:[#allocation3] sm:$0xff] %vm74, %v81
      %84 = vst.msk [vmem:[#allocation3 + $0x8] sm:$0xff] %vm74, %v81
    $region37: #{tpu_custom_call.1} parent=1 // pred_fallthru
      _
    %v85 = vld [vmem:[#allocation4] sm:$0xff]
    %v86 = vld [vmem:[#allocation4 + $0x8] sm:$0xff]
    %v87 = vld [vmem:[#allocation2] sm:$0xff]
    %v88 = vld [vmem:[#allocation2 + $0x8] sm:$0xff]
    %v89 = vld [vmem:[#allocation7] sm:$0xff]
    %v90 = vld [vmem:[#allocation7 + $0x8] sm:$0xff]
    %v91 = vld [vmem:[#allocation7 + $0x10] sm:$0xff]
    %v92 = vld [vmem:[#allocation7 + $0x18] sm:$0xff]
    %vm93 = vcmask 261120
    %v95 = vsel %vm93, %v85, 0
    %v98 = vsel %vm93, %v86, 0
    %100 = vmatprep.subr.mxu0 0.0
    %101 = vmatpush1.msra.mxu0 %v89
    %102 = vmatprep.subr.mxu0 0.0
    %103 = vmatpush1.msra.mxu0 %v90
    %104 = vmatprep.subr.mxu0 0.0
    %105 = vmatpush1.msra.mxu0 %v91
    %106 = vmatprep.subr.mxu0 0.0
    %107 = vmatpush1.msra.mxu0 %v92
    %108 = vmatprep.subr.mxu0 0.0
    %109 = vmatpush1.msra.mxu0 0.0
    %110 = vmatprep.subr.mxu0 0.0
    %111 = vmatpush1.msra.mxu0 0.0
    %112 = vmatprep.subr.mxu0 0.0
    %113 = vmatpush1.msra.mxu0 0.0
    %114 = vmatprep.subr.mxu0 0.0
    %115 = vmatpush1.msra.mxu0 0.0
    %116 = vmatprep.subr.mxu0 0.0
    %117 = vmatpush1.msra.mxu0 0.0
    %118 = vmatprep.subr.mxu0 0.0
    %119 = vmatpush1.msra.mxu0 0.0
    %120 = vmatprep.subr.mxu0 0.0
    %121 = vmatpush1.msra.mxu0 0.0
    %122 = vmatprep.subr.mxu0 0.0
    %123 = vmatpush1.msra.mxu0 0.0
    %124 = vmatprep.subr.mxu0 0.0
    %125 = vmatpush1.msra.mxu0 0.0
    %126 = vmatprep.subr.mxu0 0.0
    %127 = vmatpush1.msra.mxu0 0.0
    %128 = vmatprep.subr.mxu0 0.0
    %129 = vmatpush1.msra.mxu0 0.0
    %130 = vmatprep.subr.mxu0 0.0
    %131 = vmatpush1.msra.mxu0 0.0
    %132 = vmatprep.subr.mxu0 0.0
    %133 = vmatpush1.msra.mxu0 0.0
    %134 = vmatprep.subr.mxu0 0.0
    %135 = vmatpush1.msra.mxu0 0.0
    %136 = vmatprep.subr.mxu0 0.0
    %137 = vmatpush1.msra.mxu0 0.0
    %138 = vmatprep.subr.mxu0 0.0
    %139 = vmatpush1.msra.mxu0 0.0
    %140 = vmatprep.subr.mxu0 0.0
    %141 = vmatpush1.msra.mxu0 0.0
    %142 = vmatprep.subr.mxu0 0.0
    %143 = vmatpush1.msra.mxu0 0.0
    %144 = vmatprep.subr.mxu0 0.0
    %145 = vmatpush1.msra.mxu0 0.0
    %146 = vmatprep.subr.mxu0 0.0
    %147 = vmatpush1.msra.mxu0 0.0
    %148 = vmatprep.subr.mxu0 0.0
    %149 = vmatpush1.msra.mxu0 0.0
    %150 = vmatprep.subr.mxu0 0.0
    %151 = vmatpush1.msra.mxu0 0.0
    %152 = vmatprep.subr.mxu0 0.0
    %153 = vmatpush1.msra.mxu0 0.0
    %154 = vmatprep.subr.mxu0 0.0
    %155 = vmatpush1.msra.mxu0 0.0
    %156 = vmatprep.subr.mxu0 0.0
    %157 = vmatpush1.msra.mxu0 0.0
    %158 = vmatprep.subr.mxu0 0.0
    %159 = vmatpush1.msra.mxu0 0.0
    %160 = vmatprep.subr.mxu0 0.0
    %161 = vmatpush1.msra.mxu0 0.0
    %162 = vmatprep.subr.mxu0 0.0
    %163 = vmatpush1.msra.mxu0 0.0
    %164 = vmatprep.mubr.f32.mxu0 0.0
    %165 = vmatmul.mubr.f32.gmra.mrb[0].mxu0 %v95
    %v166 = vpop.f32.mrb[0].mxu0
    %v167 = vadd.f32 0.0, %v166
    %v168 = vpop.f32.mrb[0].mxu0
    %169 = vmatprep.mubr.f32.mxu0 0.0
    %170 = vmatmul.mubr.f32.gmra.mrb[0].mxu0 %v98
    %v171 = vpop.f32.mrb[0].mxu0
    %v172 = vadd.f32 0.0, %v171
    %v173 = vpop.f32.mrb[0].mxu0
    %174 = vdwg.mxu0
    %v175 = vadd.f32 %v87, %v167
    %v176 = vadd.f32 %v88, %v172
    %177 = vst.msk [vmem:[#allocation2] sm:$0xff] %vm93, %v175
    %178 = vst.msk [vmem:[#allocation2 + $0x8] sm:$0xff] %vm93, %v176
    %v179 = vld [vmem:[#allocation3] sm:$0xff]
    %v180 = vld [vmem:[#allocation3 + $0x8] sm:$0xff]
    %v181 = vld [vmem:[#allocation9] sm:$0xff]
    %v182 = vld [vmem:[#allocation9 + $0x8] sm:$0xff]
    %v183 = vld [vmem:[#allocation9 + $0x10] sm:$0xff]
    %v184 = vld [vmem:[#allocation9 + $0x18] sm:$0xff]
    %185 = vmatprep.subr.mxu0 0.0
    %186 = vmatpush1.msra.mxu0 %v181
    %187 = vmatprep.subr.mxu0 0.0
    %188 = vmatpush1.msra.mxu0 %v182
    %189 = vmatprep.subr.mxu0 0.0
    %190 = vmatpush1.msra.mxu0 %v183
    %191 = vmatprep.subr.mxu0 0.0
    %192 = vmatpush1.msra.mxu0 %v184
    %193 = vmatprep.subr.mxu0 0.0
    %194 = vmatpush1.msra.mxu0 0.0
    %195 = vmatprep.subr.mxu0 0.0
    %196 = vmatpush1.msra.mxu0 0.0
    %197 = vmatprep.subr.mxu0 0.0
    %198 = vmatpush1.msra.mxu0 0.0
    %199 = vmatprep.subr.mxu0 0.0
    %200 = vmatpush1.msra.mxu0 0.0
    %201 = vmatprep.subr.mxu0 0.0
    %202 = vmatpush1.msra.mxu0 0.0
    %203 = vmatprep.subr.mxu0 0.0
    %204 = vmatpush1.msra.mxu0 0.0
    %205 = vmatprep.subr.mxu0 0.0
    %206 = vmatpush1.msra.mxu0 0.0
    %207 = vmatprep.subr.mxu0 0.0
    %208 = vmatpush1.msra.mxu0 0.0
    %209 = vmatprep.subr.mxu0 0.0
    %210 = vmatpush1.msra.mxu0 0.0
    %211 = vmatprep.subr.mxu0 0.0
    %212 = vmatpush1.msra.mxu0 0.0
    %213 = vmatprep.subr.mxu0 0.0
    %214 = vmatpush1.msra.mxu0 0.0
    %215 = vmatprep.subr.mxu0 0.0
    %216 = vmatpush1.msra.mxu0 0.0
    %217 = vmatprep.subr.mxu0 0.0
    %218 = vmatpush1.msra.mxu0 0.0
    %219 = vmatprep.subr.mxu0 0.0
    %220 = vmatpush1.msra.mxu0 0.0
    %221 = vmatprep.subr.mxu0 0.0
    %222 = vmatpush1.msra.mxu0 0.0
    %223 = vmatprep.subr.mxu0 0.0
    %224 = vmatpush1.msra.mxu0 0.0
    %225 = vmatprep.subr.mxu0 0.0
    %226 = vmatpush1.msra.mxu0 0.0
    %227 = vmatprep.subr.mxu0 0.0
    %228 = vmatpush1.msra.mxu0 0.0
    %229 = vmatprep.subr.mxu0 0.0
    %230 = vmatpush1.msra.mxu0 0.0
    %231 = vmatprep.subr.mxu0 0.0
    %232 = vmatpush1.msra.mxu0 0.0
    %233 = vmatprep.subr.mxu0 0.0
    %234 = vmatpush1.msra.mxu0 0.0
    %235 = vmatprep.subr.mxu0 0.0
    %236 = vmatpush1.msra.mxu0 0.0
    %237 = vmatprep.subr.mxu0 0.0
    %238 = vmatpush1.msra.mxu0 0.0
    %239 = vmatprep.subr.mxu0 0.0
    %240 = vmatpush1.msra.mxu0 0.0
    %241 = vmatprep.subr.mxu0 0.0
    %242 = vmatpush1.msra.mxu0 0.0
    %243 = vmatprep.subr.mxu0 0.0
    %244 = vmatpush1.msra.mxu0 0.0
    %245 = vmatprep.subr.mxu0 0.0
    %246 = vmatpush1.msra.mxu0 0.0
    %247 = vmatprep.subr.mxu0 0.0
    %248 = vmatpush1.msra.mxu0 0.0
    %249 = vmatprep.mubr.f32.mxu0 0.0
    %250 = vmatmul.mubr.f32.gmra.mrb[0].mxu0 %v95
    %v251 = vpop.f32.mrb[0].mxu0
    %v252 = vadd.f32 0.0, %v251
    %v253 = vpop.f32.mrb[0].mxu0
    %254 = vmatprep.mubr.f32.mxu0 0.0
    %255 = vmatmul.mubr.f32.gmra.mrb[0].mxu0 %v98
    %v256 = vpop.f32.mrb[0].mxu0
    %v257 = vadd.f32 0.0, %v256
    %v258 = vpop.f32.mrb[0].mxu0
    %259 = vdwg.mxu0
    %v260 = vadd.f32 %v179, %v252
    %v261 = vadd.f32 %v180, %v257
    %262 = vst.msk [vmem:[#allocation3] sm:$0xff] %vm93, %v260
    %263 = vst.msk [vmem:[#allocation3 + $0x8] sm:$0xff] %vm93, %v261
    // Predicated region
    $region38: #{tpu_custom_call.1} parent=1 // pred_check
      %p264 = pneg %p62
    $region39: #{tpu_custom_call.1} parent=1 // pred_check_branch
      %266 = sbr.rel (%p264) target = $region41
    $region40: #{tpu_custom_call.1} parent=1 // pred_region
      %v267 = vld [vmem:[#allocation2] sm:$0xff]
      %v268 = vld [vmem:[#allocation2 + $0x8] sm:$0xff]
      %v269 = vld [vmem:[#allocation3] sm:$0xff]
      %v270 = vld [vmem:[#allocation3 + $0x8] sm:$0xff]
      %v271 = vmul.f32 %v269, 0.5
      %v272 = vmul.f32 %v270, 0.5
      %v273 = vmul.f32 %v269, 0.70710677
      %v274 = vmul.f32 %v270, 0.70710677
      %v275 = verf.f32.pop %v273
      %v276 = verf.f32.pop %v274
      %v277 = vadd.f32 %v275, 1.0
      %v278 = vadd.f32 %v276, 1.0
      %v279 = vmul.f32 %v271, %v277
      %v280 = vmul.f32 %v272, %v278
      %v281 = vmul.f32 %v267, %v279
      %v282 = vmul.f32 %v268, %v280
      %283 = vst.msk [vmem:[#allocation10] sm:$0xff] %vm93, %v281
      %284 = vst.msk [vmem:[#allocation10 + $0x8] sm:$0xff] %vm93, %v282
    $region41: #{tpu_custom_call.1} parent=1 // pred_fallthru
      _
    // Predicated region
    $region42: #{tpu_custom_call.1} parent=1 // pred_check
      _
    $region43: #{tpu_custom_call.1} parent=1 // pred_check_branch
      %286 = sbr.rel (0) target = $region45
    $region44: #{tpu_custom_call.1} parent=1 // pred_region
      %s288 = ssub.s32 256, 256
      %289 = vsyncadd [#allocation6], %s288
      %s290 = sshll.u32 [#allocation10], 4
      %s291 = int_to_ptr.vmem [resolvable:$true] %s290
      %296 = dma.vmem_to_hbm [thread:$0]  %s291, 256, %s5, [#allocation6], 128, 128, 8
    $region45: #{tpu_custom_call.1} parent=1 // pred_fallthru
      _
    // Predicated region
    $region46: #{tpu_custom_call.1} parent=1 // pred_check
      _
    $region47: #{tpu_custom_call.1} parent=1 // pred_check_branch
      %298 = sbr.rel (0) target = $region49
    $region48: #{tpu_custom_call.1} parent=1 // pred_region
      %299 = dma.done [#allocation6], 256
    $region49: #{tpu_custom_call.1} parent=1 // pred_fallthru
      _
    %300 = vsyncpa [#allocation5], 1
    %301 = vsyncpa [#allocation8], 1
    %302 = vsyncpa [#allocation6], 1

</llo_original>
